<compile_context>
chip_gen: v6e
topology: v6e:2x2x1
jax: 0.10.0
libtpu: 0.0.40
codegen_flags: <defaults>
</compile_context>

<pallas_src>
import functools

import jax
import jax.numpy as jnp
from jax.experimental import pallas as pl
from jax.experimental.pallas import tpu as pltpu

_BIG = 99999.0
_EMPIRICAL_THRESH = 0.008  # find_hard_negatives(empirical_thresh=0.008)


def _dsm_kernel(a_ref, p_ref, hist_ref, mom_ref, loss_ref, hist_out_ref,
                *, min_val, max_val, nbins):
    a = a_ref[...]          # (cnt, D) f32, unit-normalized descriptors
    p = p_ref[...]          # (cnt, D) f32
    cnt = a.shape[0]

    # ---- single MXU matmul: dots[i,j] = a_i . p_j ---------------------------
    dots = jax.lax.dot_general(a, p, (((1,), (1,)), ((), ())),
                               preferred_element_type=jnp.float32)      # (cnt, cnt)

    # ---- positive distance straight from the row-wise dot -------------------
    # (VPU dot instead of diag(dots); tiny fp divergence from the reference,
    #  well inside the validation tolerance.)
    ap = jnp.sum(a * p, axis=1, keepdims=True)                          # (cnt, 1)
    pos = jnp.sqrt(jnp.maximum(2.0 * (1.0 - ap) + 1e-6, 0.0))           # (cnt, 1)

    # ---- hard-negative mining in dot-product space ---------------------------
    # d = sqrt(max(2*(1-dot)+1e-6, 0)) is monotone decreasing in dot, so
    #   min distance == max dot   and   d < thresh  ==  dot > dot_thresh.
    # Masked entries get a fill value that maps exactly back to distance _BIG,
    # so fully-masked (degenerate) rows/cols match the reference.
    big2 = _BIG * _BIG
    thresh2 = _EMPIRICAL_THRESH * _EMPIRICAL_THRESH
    dot_thresh = 1.0 - 0.5 * (thresh2 - 1e-6)
    fill_dot = 1.0 - 0.5 * (big2 - 1e-6)

    row = jax.lax.broadcasted_iota(jnp.int32, (cnt, cnt), 0)
    col = jax.lax.broadcasted_iota(jnp.int32, (cnt, cnt), 1)
    diag = row == col
    masked = jnp.where(diag | (dots > dot_thresh), fill_dot, dots)      # (cnt, cnt)

    row_max = jnp.max(masked, axis=1, keepdims=True)                    # (cnt, 1)
    col_max_row = jnp.max(masked, axis=0, keepdims=True)                # (1, cnt)
    # lane -> sublane relayout of the column maxima on the (idle) MXU:
    # identity @ col_max_row^T == transpose of the (1,cnt) vector.
    eye = jnp.where(diag, 1.0, 0.0)                                     # (cnt, cnt)
    col_max = jax.lax.dot_general(eye, col_max_row, (((1,), (1,)), ((), ())),
                                  preferred_element_type=jnp.float32)   # (cnt, 1)
    neg_dot = jnp.maximum(row_max, col_max)                             # (cnt, 1)
    neg = jnp.sqrt(jnp.maximum(2.0 * (1.0 - neg_dot) + 1e-6, 0.0))      # (cnt, 1)

    # ---- soft histogram with linear interpolation ----------------------------
    diff = pos - neg                                                    # (cnt, 1)
    hist_var = jnp.clip(diff, min_val, max_val)                         # (cnt, 1)
    bin_width = (max_val - min_val) / (nbins - 1)
    inv_bw = 1.0 / bin_width                       # folded 1/bin_width constant
    lo = jnp.clip(jnp.floor((hist_var - min_val) * inv_bw).astype(jnp.int32),
                  0, nbins - 1)                                         # (cnt, 1)
    hi = jnp.minimum(lo + 1, nbins - 1)                                 # (cnt, 1)
    alpha = 1.0 - (hist_var - min_val - lo.astype(jnp.float32) * bin_width) * inv_bw

    bins = jax.lax.broadcasted_iota(jnp.int32, (cnt, nbins), 1)         # (cnt, nbins)
    contrib_lo = jnp.where(bins == lo, alpha, 0.0)                      # (cnt, nbins)
    contrib_hi = jnp.where(bins == hi, 1.0 - alpha, 0.0)                # (cnt, nbins)
    # two XLU column reductions instead of a (cnt,nbins) VPU add + one reduce
    hist_batch = (jnp.sum(contrib_lo, axis=0, keepdims=True)
                  + jnp.sum(contrib_hi, axis=0, keepdims=True))         # (1, nbins)
    # exact divides on (1,nbins)/scalars: negligible, and approx EUP reciprocal
    # would exceed the 1e-4 / 1e-6 validation tolerances vs the exact reference.
    hist_batch = hist_batch / (jnp.sum(hist_batch) + 1e-6)

    mom = mom_ref[0, 0]                                                 # SMEM scalar
    new_hist = (1.0 - mom) * hist_ref[...] + mom * hist_batch           # (1, nbins)
    hist_out_ref[...] = new_hist

    # ---- CDF-based weighting: CDF[lo] == prefix_mask @ pdf (MXU) -------------
    pdf = new_hist / jnp.sum(new_hist)                                  # (1, nbins)
    prefix = jnp.where(bins <= lo, 1.0, 0.0)                            # (cnt, nbins)
    weight = jax.lax.dot_general(prefix, pdf, (((1,), (1,)), ((), ())),
                                 preferred_element_type=jnp.float32)    # (cnt, 1)

    # fused: -mean(neg*w) + mean(pos*w) == mean((pos-neg)*w)
    loss_ref[0, 0] = jnp.sum(diff * weight) * (1.0 / cnt)               # SMEM scalar


def _vmem_ceiling_bytes():
    """~80% of physical VMEM (v5e/v6e: 128 MiB -> ~102 MiB, v7x: 64 MiB ->
    ~51 MiB); conservative ~51 MiB if the hardware query is unavailable."""
    try:
        cap = int(pltpu.get_tpu_info().vmem_capacity_bytes)
    except Exception:  # pragma: no cover - query unavailable
        cap = 64 * 1024 * 1024
    return max(int(cap * 0.8), 32 * 1024 * 1024)


@functools.partial(jax.jit, static_argnames=("min_val", "max_val"))
def _dsm_forward(a, p, hist, mom, *, min_val, max_val):
    cnt, d = a.shape
    nbins = hist.shape[1]
    kernel = functools.partial(_dsm_kernel, min_val=min_val, max_val=max_val,
                               nbins=nbins)

    # rough f32 working set: ~3 live (cnt,cnt) + ~3 live (cnt,nbins) + inputs,
    # with 2x margin; floor at the 32 MiB scoped default, generation-aware cap.
    vmem_est = 4 * (3 * cnt * cnt + 3 * cnt * nbins + 2 * cnt * d + 8 * nbins)
    vmem_limit = int(min(max(2 * vmem_est, 32 * 1024 * 1024),
                         _vmem_ceiling_bytes()))

    loss, new_hist = pl.pallas_call(
        kernel,
        out_shape=(jax.ShapeDtypeStruct((1, 1), jnp.float32),
                   jax.ShapeDtypeStruct((1, nbins), jnp.float32)),
        # grid-less, whole-array residency: single-buffered inputs, no pipeline.
        in_specs=[
            pl.BlockSpec(memory_space=pltpu.MemorySpace.VMEM),   # a
            pl.BlockSpec(memory_space=pltpu.MemorySpace.VMEM),   # p
            pl.BlockSpec(memory_space=pltpu.MemorySpace.VMEM),   # running hist
            pl.BlockSpec(memory_space=pltpu.MemorySpace.SMEM),   # momentum scalar
        ],
        out_specs=(
            pl.BlockSpec(memory_space=pltpu.MemorySpace.SMEM),   # scalar loss
            pl.BlockSpec(memory_space=pltpu.MemorySpace.VMEM),   # updated hist
        ),
        compiler_params=pltpu.CompilerParams(vmem_limit_bytes=vmem_limit),
    )(a, p, hist, mom)
    return loss, new_hist


class DynamicSoftMarginLoss:
    """JAX port of the PyTorch module (is_binary=False). Histogram buffer is
    carried as module state and updated each call, like register_buffer."""

    def __init__(self, momentum=0.01, max_dist=None, nbins=512):
        if max_dist is None:
            max_dist = 2.0
        self._momentum = float(momentum)
        self._max_val = float(max_dist)
        self._min_val = -float(max_dist)
        self._nbins = int(nbins)
        self.histogram = jnp.ones((1, self._nbins), dtype=jnp.float32)
        self._stats_initialized = False

    def __call__(self, x):
        x = x.astype(jnp.float32)
        cnt = x.shape[0] // 2
        a = x[:cnt, :]
        p = x[cnt:, :]
        mom = 1.0 if not self._stats_initialized else self._momentum
        mom_arr = jnp.full((1, 1), mom, dtype=jnp.float32)
        loss, new_hist = _dsm_forward(a, p, self.histogram, mom_arr,
                                      min_val=self._min_val,
                                      max_val=self._max_val)
        self.histogram = new_hist
        self._stats_initialized = True
        return loss[0, 0]


# ---------------------------- pure-JAX reference -----------------------------
def _reference(x, hist, momentum, min_val, max_val):
    cnt = x.shape[0] // 2
    a, p = x[:cnt], x[cnt:]
    dots = a @ p.T
    dmat = jnp.sqrt(jnp.maximum(2.0 * (1.0 - dots) + 1e-6, 0.0))
    pos = jnp.diag(dmat)
    eye = jnp.eye(cnt, dtype=bool)
    dmat_m = jnp.where(eye | (dmat < _EMPIRICAL_THRESH), _BIG, dmat)
    neg = jnp.minimum(dmat_m.min(axis=0), dmat_m.min(axis=1))
    hist_var = jnp.clip(pos - neg, min_val, max_val)
    nbins = hist.shape[-1]
    bw = (max_val - min_val) / (nbins - 1)
    inv_bw = 1.0 / bw
    lo = jnp.clip(jnp.floor((hist_var - min_val) * inv_bw).astype(jnp.int32),
                  0, nbins - 1)
    hi = jnp.clip(lo + 1, 0, nbins - 1)
    alpha = 1.0 - (hist_var - min_val - lo.astype(jnp.float32) * bw) * inv_bw
    hb = jnp.zeros(nbins, jnp.float32).at[lo].add(alpha).at[hi].add(1.0 - alpha)
    hb = hb / (hb.sum() + 1e-6)
    new_hist = (1.0 - momentum) * hist.reshape(-1) + momentum * hb
    pdf = new_hist / new_hist.sum()
    cdf = jnp.cumsum(pdf)
    weight = cdf[lo]
    loss = -(neg * weight).mean() + (pos * weight).mean()
    return loss, new_hist.reshape(1, -1)


if __name__ == "__main__":
    key = jax.random.PRNGKey(0)
    N, D = 64, 32          # 32 anchor/positive pairs, 32-dim descriptors
    x = jax.random.normal(key, (N, D), dtype=jnp.float32)
    x = x / jnp.linalg.norm(x, axis=1, keepdims=True)  # unit-L2 descriptors

    crit = DynamicSoftMarginLoss(momentum=0.01, max_dist=2.0, nbins=512)
    init_hist = crit.histogram
    loss = crit(x)
    jax.block_until_ready(loss)
    jax.block_until_ready(crit.histogram)

    # sanity check against a pure-JAX reference (first call => momentum = 1.0)
    ref_loss, ref_hist = _reference(x, init_hist, 1.0, -2.0, 2.0)
    assert jnp.allclose(loss, ref_loss, rtol=1e-4, atol=1e-5), (loss, ref_loss)
    assert jnp.allclose(crit.histogram, ref_hist, rtol=1e-4, atol=1e-6)

    # second call exercises the momentum (0.01) path
    loss2 = crit(x)
    jax.block_until_ready(loss2)

    print("KERNEL_OK")
</pallas_src>

<mosaic_0001>
module attributes {stable_mosaic.version = 11 : i64} {
  func.func @_dsm_kernel(%arg0: memref<32x32xf32, #tpu.memory_space<vmem>>, %arg1: memref<32x32xf32, #tpu.memory_space<vmem>>, %arg2: memref<1x512xf32, #tpu.memory_space<vmem>>, %arg3: memref<1x1xf32, #tpu.memory_space<smem>>, %arg4: memref<1x1xf32, #tpu.memory_space<smem>>, %arg5: memref<1x512xf32, #tpu.memory_space<vmem>>) attributes {dimension_semantics = [], scalar_prefetch = 0 : i64, scratch_operands = 0 : i64, tpu.core_type = #tpu.core_type<tc>} {
    %c0 = arith.constant 0 : index
    %c0_0 = arith.constant 0 : index
    %0 = vector.load %arg0[%c0, %c0_0] : memref<32x32xf32, #tpu.memory_space<vmem>>, vector<32x32xf32>
    %c0_1 = arith.constant 0 : index
    %c0_2 = arith.constant 0 : index
    %1 = vector.load %arg1[%c0_1, %c0_2] : memref<32x32xf32, #tpu.memory_space<vmem>>, vector<32x32xf32>
    %cst = arith.constant dense<0.000000e+00> : vector<32x32xf32>
    %2 = tpu.matmul %0, %1, %cst {dimension_numbers = #tpu.dot_dimension_numbers<[1], [1], [0], [0], [0, 0, 1, 0], [], []>} : vector<32x32xf32>, vector<32x32xf32>, vector<32x32xf32> -> vector<32x32xf32>
    %3 = arith.mulf %0, %1 : vector<32x32xf32>
    %cst_3 = arith.constant dense<0.000000e+00> : vector<32xf32>
    %4 = vector.multi_reduction <add>, %3, %cst_3 [1] : vector<32x32xf32> to vector<32xf32>
    %5 = vector.shape_cast %4 : vector<32xf32> to vector<32x1xf32>
    %cst_4 = arith.constant 1.000000e+00 : f32
    %6 = vector.broadcast %cst_4 : f32 to vector<32x1xf32>
    %7 = arith.subf %6, %5 : vector<32x1xf32>
    %cst_5 = arith.constant 2.000000e+00 : f32
    %8 = vector.broadcast %cst_5 : f32 to vector<32x1xf32>
    %9 = arith.mulf %8, %7 : vector<32x1xf32>
    %cst_6 = arith.constant 9.99999997E-7 : f32
    %10 = vector.broadcast %cst_6 : f32 to vector<32x1xf32>
    %11 = arith.addf %9, %10 : vector<32x1xf32>
    %cst_7 = arith.constant 0.000000e+00 : f32
    %12 = vector.broadcast %cst_7 : f32 to vector<32x1xf32>
    %13 = arith.maximumf %11, %12 : vector<32x1xf32>
    %14 = math.sqrt %13 : vector<32x1xf32>
    %15 = tpu.iota {dimensions = array<i32: 0>} : vector<32x32xi32>
    %16 = tpu.iota {dimensions = array<i32: 1>} : vector<32x32xi32>
    %17 = arith.cmpi eq, %15, %16 : vector<32x32xi32>
    %cst_8 = arith.constant 0.999968528 : f32
    %18 = vector.broadcast %cst_8 : f32 to vector<32x32xf32>
    %19 = arith.cmpf ogt, %2, %18 : vector<32x32xf32>
    %20 = arith.ori %17, %19 : vector<32x32xi1>
    %cst_9 = arith.constant -4.999900e+09 : f32
    %21 = vector.broadcast %cst_9 : f32 to vector<32x32xf32>
    %22 = arith.select %20, %21, %2 : vector<32x32xi1>, vector<32x32xf32>
    %cst_10 = arith.constant dense<0xFF800000> : vector<32xf32>
    %23 = vector.multi_reduction <maximumf>, %22, %cst_10 [1] : vector<32x32xf32> to vector<32xf32>
    %24 = vector.shape_cast %23 : vector<32xf32> to vector<32x1xf32>
    %cst_11 = arith.constant dense<0xFF800000> : vector<32xf32>
    %25 = vector.multi_reduction <maximumf>, %22, %cst_11 [0] : vector<32x32xf32> to vector<32xf32>
    %26 = vector.shape_cast %25 : vector<32xf32> to vector<1x32xf32>
    %cst_12 = arith.constant 1.000000e+00 : f32
    %cst_13 = arith.constant 0.000000e+00 : f32
    %27 = vector.broadcast %cst_12 : f32 to vector<32x32xf32>
    %28 = vector.broadcast %cst_13 : f32 to vector<32x32xf32>
    %29 = arith.select %17, %27, %28 : vector<32x32xi1>, vector<32x32xf32>
    %cst_14 = arith.constant dense<0.000000e+00> : vector<32x1xf32>
    %30 = tpu.matmul %29, %26, %cst_14 {dimension_numbers = #tpu.dot_dimension_numbers<[1], [1], [0], [0], [0, 0, 1, 0], [], []>} : vector<32x32xf32>, vector<1x32xf32>, vector<32x1xf32> -> vector<32x1xf32>
    %31 = arith.maximumf %24, %30 : vector<32x1xf32>
    %cst_15 = arith.constant 1.000000e+00 : f32
    %32 = vector.broadcast %cst_15 : f32 to vector<32x1xf32>
    %33 = arith.subf %32, %31 : vector<32x1xf32>
    %cst_16 = arith.constant 2.000000e+00 : f32
    %34 = vector.broadcast %cst_16 : f32 to vector<32x1xf32>
    %35 = arith.mulf %34, %33 : vector<32x1xf32>
    %cst_17 = arith.constant 9.99999997E-7 : f32
    %36 = vector.broadcast %cst_17 : f32 to vector<32x1xf32>
    %37 = arith.addf %35, %36 : vector<32x1xf32>
    %cst_18 = arith.constant 0.000000e+00 : f32
    %38 = vector.broadcast %cst_18 : f32 to vector<32x1xf32>
    %39 = arith.maximumf %37, %38 : vector<32x1xf32>
    %40 = math.sqrt %39 : vector<32x1xf32>
    %41 = arith.subf %14, %40 : vector<32x1xf32>
    %cst_19 = arith.constant -2.000000e+00 : f32
    %cst_20 = arith.constant 2.000000e+00 : f32
    %42 = vector.broadcast %cst_19 : f32 to vector<32x1xf32>
    %43 = arith.maximumf %42, %41 : vector<32x1xf32>
    %44 = vector.broadcast %cst_20 : f32 to vector<32x1xf32>
    %45 = arith.minimumf %44, %43 : vector<32x1xf32>
    %cst_21 = arith.constant -2.000000e+00 : f32
    %46 = vector.broadcast %cst_21 : f32 to vector<32x1xf32>
    %47 = arith.subf %45, %46 : vector<32x1xf32>
    %cst_22 = arith.constant 1.277500e+02 : f32
    %48 = vector.broadcast %cst_22 : f32 to vector<32x1xf32>
    %49 = arith.mulf %47, %48 : vector<32x1xf32>
    %50 = math.floor %49 : vector<32x1xf32>
    %51 = arith.fptosi %50 : vector<32x1xf32> to vector<32x1xi32>
    %c0_i32 = arith.constant 0 : i32
    %c511_i32 = arith.constant 511 : i32
    %52 = vector.broadcast %c0_i32 : i32 to vector<32x1xi32>
    %53 = arith.maxsi %52, %51 : vector<32x1xi32>
    %54 = vector.broadcast %c511_i32 : i32 to vector<32x1xi32>
    %55 = arith.minsi %54, %53 : vector<32x1xi32>
    %c1_i32 = arith.constant 1 : i32
    %56 = vector.broadcast %c1_i32 : i32 to vector<32x1xi32>
    %57 = arith.addi %55, %56 : vector<32x1xi32>
    %c511_i32_23 = arith.constant 511 : i32
    %58 = vector.broadcast %c511_i32_23 : i32 to vector<32x1xi32>
    %59 = arith.minsi %57, %58 : vector<32x1xi32>
    %cst_24 = arith.constant -2.000000e+00 : f32
    %60 = vector.broadcast %cst_24 : f32 to vector<32x1xf32>
    %61 = arith.subf %45, %60 : vector<32x1xf32>
    %62 = arith.sitofp %55 : vector<32x1xi32> to vector<32x1xf32>
    %cst_25 = arith.constant 0.00782778859 : f32
    %63 = vector.broadcast %cst_25 : f32 to vector<32x1xf32>
    %64 = arith.mulf %62, %63 : vector<32x1xf32>
    %65 = arith.subf %61, %64 : vector<32x1xf32>
    %cst_26 = arith.constant 1.277500e+02 : f32
    %66 = vector.broadcast %cst_26 : f32 to vector<32x1xf32>
    %67 = arith.mulf %65, %66 : vector<32x1xf32>
    %cst_27 = arith.constant 1.000000e+00 : f32
    %68 = vector.broadcast %cst_27 : f32 to vector<32x1xf32>
    %69 = arith.subf %68, %67 : vector<32x1xf32>
    %70 = tpu.iota {dimensions = array<i32: 1>} : vector<32x512xi32>
    %71 = vector.broadcast %55 : vector<32x1xi32> to vector<32x512xi32>
    %72 = arith.cmpi eq, %70, %71 : vector<32x512xi32>
    %cst_28 = arith.constant 0.000000e+00 : f32
    %73 = vector.shape_cast %69 : vector<32x1xf32> to vector<32x1xf32>
    %74 = vector.broadcast %73 : vector<32x1xf32> to vector<32x512xf32>
    %75 = vector.broadcast %cst_28 : f32 to vector<32x512xf32>
    %76 = arith.select %72, %74, %75 : vector<32x512xi1>, vector<32x512xf32>
    %77 = vector.broadcast %59 : vector<32x1xi32> to vector<32x512xi32>
    %78 = arith.cmpi eq, %70, %77 : vector<32x512xi32>
    %cst_29 = arith.constant 1.000000e+00 : f32
    %79 = vector.broadcast %cst_29 : f32 to vector<32x1xf32>
    %80 = arith.subf %79, %69 : vector<32x1xf32>
    %cst_30 = arith.constant 0.000000e+00 : f32
    %81 = vector.shape_cast %80 : vector<32x1xf32> to vector<32x1xf32>
    %82 = vector.broadcast %81 : vector<32x1xf32> to vector<32x512xf32>
    %83 = vector.broadcast %cst_30 : f32 to vector<32x512xf32>
    %84 = arith.select %78, %82, %83 : vector<32x512xi1>, vector<32x512xf32>
    %cst_31 = arith.constant dense<0.000000e+00> : vector<512xf32>
    %85 = vector.multi_reduction <add>, %76, %cst_31 [0] : vector<32x512xf32> to vector<512xf32>
    %86 = vector.shape_cast %85 : vector<512xf32> to vector<1x512xf32>
    %cst_32 = arith.constant dense<0.000000e+00> : vector<512xf32>
    %87 = vector.multi_reduction <add>, %84, %cst_32 [0] : vector<32x512xf32> to vector<512xf32>
    %88 = vector.shape_cast %87 : vector<512xf32> to vector<1x512xf32>
    %89 = arith.addf %86, %88 : vector<1x512xf32>
    %90 = vector.shape_cast %89 : vector<1x512xf32> to vector<1x1x512xf32>
    %cst_33 = arith.constant dense<0.000000e+00> : vector<1xf32>
    %91 = vector.multi_reduction <add>, %90, %cst_33 [1, 2] : vector<1x1x512xf32> to vector<1xf32>
    %92 = vector.shape_cast %91 : vector<1xf32> to vector<1x1x1xf32>
    %93 = vector.extract %92[0, 0, 0] : f32 from vector<1x1x1xf32>
    %cst_34 = arith.constant 9.99999997E-7 : f32
    %94 = arith.addf %93, %cst_34 : f32
    %95 = vector.broadcast %94 : f32 to vector<1x512xf32>
    %96 = arith.divf %89, %95 : vector<1x512xf32>
    %c0_35 = arith.constant 0 : index
    %c0_36 = arith.constant 0 : index
    %97 = memref.load %arg3[%c0_35, %c0_36] : memref<1x1xf32, #tpu.memory_space<smem>>
    %cst_37 = arith.constant 1.000000e+00 : f32
    %98 = arith.subf %cst_37, %97 : f32
    %c0_38 = arith.constant 0 : index
    %c0_39 = arith.constant 0 : index
    %99 = vector.load %arg2[%c0_38, %c0_39] : memref<1x512xf32, #tpu.memory_space<vmem>>, vector<1x512xf32>
    %100 = vector.broadcast %98 : f32 to vector<1x512xf32>
    %101 = arith.mulf %100, %99 : vector<1x512xf32>
    %102 = vector.broadcast %97 : f32 to vector<1x512xf32>
    %103 = arith.mulf %102, %96 : vector<1x512xf32>
    %104 = arith.addf %101, %103 : vector<1x512xf32>
    %c0_40 = arith.constant 0 : index
    %c0_41 = arith.constant 0 : index
    %105 = vector.load %arg5[%c0_40, %c0_41] : memref<1x512xf32, #tpu.memory_space<vmem>>, vector<1x512xf32>
    tpu.vector_store %arg5[%c0_40, %c0_41], %104 {strides = array<i32>} : memref<1x512xf32, #tpu.memory_space<vmem>>, vector<1x512xf32>,
    %106 = vector.shape_cast %104 : vector<1x512xf32> to vector<1x1x512xf32>
    %cst_42 = arith.constant dense<0.000000e+00> : vector<1xf32>
    %107 = vector.multi_reduction <add>, %106, %cst_42 [1, 2] : vector<1x1x512xf32> to vector<1xf32>
    %108 = vector.shape_cast %107 : vector<1xf32> to vector<1x1x1xf32>
    %109 = vector.extract %108[0, 0, 0] : f32 from vector<1x1x1xf32>
    %110 = vector.broadcast %109 : f32 to vector<1x512xf32>
    %111 = arith.divf %104, %110 : vector<1x512xf32>
    %112 = vector.broadcast %55 : vector<32x1xi32> to vector<32x512xi32>
    %113 = arith.cmpi sle, %70, %112 : vector<32x512xi32>
    %cst_43 = arith.constant 1.000000e+00 : f32
    %cst_44 = arith.constant 0.000000e+00 : f32
    %114 = vector.broadcast %cst_43 : f32 to vector<32x512xf32>
    %115 = vector.broadcast %cst_44 : f32 to vector<32x512xf32>
    %116 = arith.select %113, %114, %115 : vector<32x512xi1>, vector<32x512xf32>
    %cst_45 = arith.constant dense<0.000000e+00> : vector<32x1xf32>
    %117 = tpu.matmul %116, %111, %cst_45 {dimension_numbers = #tpu.dot_dimension_numbers<[1], [1], [0], [0], [0, 0, 1, 0], [], []>} : vector<32x512xf32>, vector<1x512xf32>, vector<32x1xf32> -> vector<32x1xf32>
    %118 = arith.mulf %41, %117 : vector<32x1xf32>
    %119 = vector.shape_cast %118 : vector<32x1xf32> to vector<1x32x1xf32>
    %cst_46 = arith.constant dense<0.000000e+00> : vector<1xf32>
    %120 = vector.multi_reduction <add>, %119, %cst_46 [1, 2] : vector<1x32x1xf32> to vector<1xf32>
    %121 = vector.shape_cast %120 : vector<1xf32> to vector<1x1x1xf32>
    %122 = vector.extract %121[0, 0, 0] : f32 from vector<1x1x1xf32>
    %cst_47 = arith.constant 3.125000e-02 : f32
    %123 = arith.mulf %122, %cst_47 : f32
    %c0_48 = arith.constant 0 : index
    %c0_49 = arith.constant 0 : index
    %124 = memref.load %arg4[%c0_48, %c0_49] : memref<1x1xf32, #tpu.memory_space<smem>>
    memref.store %123, %arg4[%c0_48, %c0_49] : memref<1x1xf32, #tpu.memory_space<smem>>
    return
  }
}

</mosaic_0001>

<llo_original>
// kernel: _dsm_forward.1
$region0: #{_dsm_forward.1}
  #allocation0 [shape = 'u32[]', space=smem, size = 0x4, offset = 0x4, fixed_abs, tag = 'smem constant byte address 0x4 - core index']
  #allocation1 [shape = 'u32[144,128]{1,0:T(1,128)}', space=vmem, size = 0x12000, scoped, tag = 'internal scratch']
  #allocation2 [shape = 'f32[1,1]{1,0:T(1,128)S(6)}', space=smem, size = 0x200, scoped, tag = 'scoped memory for _dsm_forward.1']
  %s0 = inlined_call_operand.hbm [shape: f32[32,32], index: 0, kind: input, shape index: {}]
  %s1 = inlined_call_operand.hbm [shape: f32[32,32], index: 1, kind: input, shape index: {}]
  %s2 = inlined_call_operand.vmem [shape: f32[1,512], index: 2, kind: input, shape index: {}]
  %s3 = inlined_call_operand.<no memory space> [shape: f32[1,1], index: 3, kind: input, shape index: {}]
  %s4 = inlined_call_operand.hbm [shape: f32[1,1], index: 4, kind: output, shape index: {0}]
  %s5 = inlined_call_operand.hbm [shape: f32[1,512], index: 5, kind: output, shape index: {1}]
  %6 = xla_tuple %s4, %s5
  %s7 = sld [smem:[#allocation0]]
  $region42: #{_dsm_forward.1} parent=0
    _
  %s9 = ssub.s32 1, %s7
  %s10 = scalar_select 0, %s9, %s7
  %11 = sst [smem:[#allocation2]] %s3
  $region1: #{_dsm_forward.1} parent=0
    #allocation3 [shape = 'u8[16384]{0}', space=vmem, size = 0x4000, scoped, tag = 'input window, operand 0, single buffered']
    #allocation4 [shape = 's32[1]{0}', space=sflag, size = 0x4, scoped, tag = 'scoped memory for _dsm_forward.1']
    #allocation5 [shape = 's32[1]{0}', space=sflag, size = 0x4, scoped, tag = 'scoped memory for _dsm_forward.1']
    #allocation6 [shape = 's32[1]{0}', space=sflag, size = 0x4, scoped, tag = 'scoped memory for _dsm_forward.1']
    #allocation7 [shape = 'u8[16384]{0}', space=vmem, size = 0x4000, scoped, tag = 'input window, operand 1, single buffered']
    #allocation8 [shape = 's32[1]{0}', space=sflag, size = 0x4, scoped, tag = 'scoped memory for _dsm_forward.1']
    #allocation9 [shape = 'u8[512]{0}', space=smem, size = 0x200, scoped, tag = 'output window, operand 0, single buffered']
    #allocation10 [shape = 'u8[2048]{0}', space=vmem, size = 0x800, scoped, tag = 'output window, operand 1, single buffered']
    %12 = vsyncpa [#allocation4], 0
    %13 = vsyncpa [#allocation8], 0
    %14 = vsyncpa [#allocation6], 0
    %15 = vsyncpa [#allocation5], 0
    // Predicated region
    $region2: #{_dsm_forward.1} parent=1 // pred_check
      _
    $region3: #{_dsm_forward.1} parent=1 // pred_check_branch
      %17 = sbr.rel (0) target = $region5
    $region4: #{_dsm_forward.1} parent=1 // pred_region
      %s19 = ssub.s32 512, 512
      %20 = vsyncadd [#allocation4], %s19
      %s21 = sshll.u32 [#allocation3], 4
      %s22 = int_to_ptr.vmem [resolvable:$true] %s21
      %27 = dma.hbm_to_vmem [thread:$0]  %s0, 512, %s22, [#allocation4], 128, 128, 8
    $region5: #{_dsm_forward.1} parent=1 // pred_fallthru
      _
    // Predicated region
    $region6: #{_dsm_forward.1} parent=1 // pred_check
      _
    $region7: #{_dsm_forward.1} parent=1 // pred_check_branch
      %29 = sbr.rel (0) target = $region9
    $region8: #{_dsm_forward.1} parent=1 // pred_region
      %s31 = ssub.s32 512, 512
      %32 = vsyncadd [#allocation8], %s31
      %s33 = sshll.u32 [#allocation7], 4
      %s34 = int_to_ptr.vmem [resolvable:$true] %s33
      %39 = dma.hbm_to_vmem [thread:$0]  %s1, 512, %s34, [#allocation8], 128, 128, 8
    $region9: #{_dsm_forward.1} parent=1 // pred_fallthru
      _
    // Predicated region
    $region10: #{_dsm_forward.1} parent=1 // pred_check
      _
    $region11: #{_dsm_forward.1} parent=1 // pred_check_branch
      %41 = sbr.rel (0) target = $region13
    $region12: #{_dsm_forward.1} parent=1 // pred_region
      _
    $region13: #{_dsm_forward.1} parent=1 // pred_fallthru
      _
    // Predicated region
    $region14: #{_dsm_forward.1} parent=1 // pred_check
      _
    $region15: #{_dsm_forward.1} parent=1 // pred_check_branch
      %43 = sbr.rel (0) target = $region17
    $region16: #{_dsm_forward.1} parent=1 // pred_region
      _
    $region17: #{_dsm_forward.1} parent=1 // pred_fallthru
      _
    // Predicated region
    $region18: #{_dsm_forward.1} parent=1 // pred_check
      _
    $region19: #{_dsm_forward.1} parent=1 // pred_check_branch
      %45 = sbr.rel (0) target = $region21
    $region20: #{_dsm_forward.1} parent=1 // pred_region
      %46 = dma.done [#allocation4], 512
    $region21: #{_dsm_forward.1} parent=1 // pred_fallthru
      _
    // Predicated region
    $region22: #{_dsm_forward.1} parent=1 // pred_check
      _
    $region23: #{_dsm_forward.1} parent=1 // pred_check_branch
      %48 = sbr.rel (0) target = $region25
    $region24: #{_dsm_forward.1} parent=1 // pred_region
      %49 = dma.done [#allocation8], 512
    $region25: #{_dsm_forward.1} parent=1 // pred_fallthru
      _
    %v50 = vld [vmem:[#allocation3] sm:$0xff]
    %v51 = vld [vmem:[#allocation3 + $0x8] sm:$0xff]
    %v52 = vld [vmem:[#allocation3 + $0x10] sm:$0xff]
    %v53 = vld [vmem:[#allocation3 + $0x18] sm:$0xff]
    %v54 = vld [vmem:[#allocation7] sm:$0xff]
    %v55 = vld [vmem:[#allocation7 + $0x8] sm:$0xff]
    %v56 = vld [vmem:[#allocation7 + $0x10] sm:$0xff]
    %v57 = vld [vmem:[#allocation7 + $0x18] sm:$0xff]
    %vm58 = vcmask 261120
    %v60 = vsel %vm58, %v50, 0
    %v63 = vsel %vm58, %v51, 0
    %v66 = vsel %vm58, %v52, 0
    %v69 = vsel %vm58, %v53, 0
    %v72 = vsel %vm58, %v54, 0
    %v75 = vsel %vm58, %v55, 0
    %v78 = vsel %vm58, %v56, 0
    %v81 = vsel %vm58, %v57, 0
    %83 = vmatprep.subr.mxu0 0.0
    %84 = vmatpush1.xpose.msra.mxu0 0.0
    %85 = vmatprep.subr.mxu0 0.0
    %86 = vmatpush1.xpose.msra.mxu0 0.0
    %87 = vmatprep.subr.mxu0 0.0
    %88 = vmatpush1.xpose.msra.mxu0 0.0
    %89 = vmatprep.subr.mxu0 0.0
    %90 = vmatpush1.xpose.msra.mxu0 0.0
    %91 = vmatprep.subr.mxu0 0.0
    %92 = vmatpush1.xpose.msra.mxu0 0.0
    %93 = vmatprep.subr.mxu0 0.0
    %94 = vmatpush1.xpose.msra.mxu0 0.0
    %95 = vmatprep.subr.mxu0 0.0
    %96 = vmatpush1.xpose.msra.mxu0 0.0
    %97 = vmatprep.subr.mxu0 0.0
    %98 = vmatpush1.xpose.msra.mxu0 0.0
    %99 = vmatprep.subr.mxu0 0.0
    %100 = vmatpush1.xpose.msra.mxu0 0.0
    %101 = vmatprep.subr.mxu0 0.0
    %102 = vmatpush1.xpose.msra.mxu0 0.0
    %103 = vmatprep.subr.mxu0 0.0
    %104 = vmatpush1.xpose.msra.mxu0 0.0
    %105 = vmatprep.subr.mxu0 0.0
    %106 = vmatpush1.xpose.msra.mxu0 0.0
    %107 = vmatprep.subr.mxu0 0.0
    %108 = vmatpush1.xpose.msra.mxu0 %v81
    %109 = vmatprep.subr.mxu0 0.0
    %110 = vmatpush1.xpose.msra.mxu0 %v78
    %111 = vmatprep.subr.mxu0 0.0
    %112 = vmatpush1.xpose.msra.mxu0 %v75
    %113 = vmatprep.subr.mxu0 0.0
    %114 = vmatpush1.xpose.msra.mxu0 %v72
    %115 = vmatprep.subr.mxu0 0.0
    %116 = vmatpush2.xpose.msra.mxu0 0.0
    %117 = vmatprep.subr.mxu0 0.0
    %118 = vmatpush2.xpose.msra.mxu0 0.0
    %119 = vmatprep.subr.mxu0 0.0
    %120 = vmatpush2.xpose.msra.mxu0 0.0
    %121 = vmatprep.subr.mxu0 0.0
    %122 = vmatpush2.xpose.msra.mxu0 0.0
    %123 = vmatprep.subr.mxu0 0.0
    %124 = vmatpush2.xpose.msra.mxu0 0.0
    %125 = vmatprep.subr.mxu0 0.0
    %126 = vmatpush2.xpose.msra.mxu0 0.0
    %127 = vmatprep.subr.mxu0 0.0
    %128 = vmatpush2.xpose.msra.mxu0 0.0
    %129 = vmatprep.subr.mxu0 0.0
    %130 = vmatpush2.xpose.msra.mxu0 0.0
    %131 = vmatprep.subr.mxu0 0.0
    %132 = vmatpush2.xpose.msra.mxu0 0.0
    %133 = vmatprep.subr.mxu0 0.0
    %134 = vmatpush2.xpose.msra.mxu0 0.0
    %135 = vmatprep.subr.mxu0 0.0
    %136 = vmatpush2.xpose.msra.mxu0 0.0
    %137 = vmatprep.subr.mxu0 0.0
    %138 = vmatpush2.xpose.msra.mxu0 0.0
    %139 = vmatprep.subr.mxu0 0.0
    %140 = vmatpush2.xpose.msra.mxu0 0.0
    %141 = vmatprep.subr.mxu0 0.0
    %142 = vmatpush2.xpose.msra.mxu0 0.0
    %143 = vmatprep.subr.mxu0 0.0
    %144 = vmatpush2.xpose.msra.mxu0 0.0
    %145 = vmatprep.subr.mxu0 0.0
    %146 = vmatpush2.xpose.msra.mxu0 0.0
    %147 = vmatprep.mubr.f32.mxu0 0.0
    %148 = vmatmul.mubr.f32.gmra.mxu0 %v60
    %v149 = vpop.f32.mrf.mxu0
    %v150 = vadd.f32 0.0, %v149
    %v151 = vpop.f32.mrf.mxu0
    %152 = vmatprep.mubr.f32.mxu0 0.0
    %153 = vmatmul.mubr.f32.gmra.mxu0 %v63
    %v154 = vpop.f32.mrf.mxu0
    %v155 = vadd.f32 0.0, %v154
    %v156 = vpop.f32.mrf.mxu0
    %157 = vmatprep.mubr.f32.mxu0 0.0
    %158 = vmatmul.mubr.f32.gmra.mxu0 %v66
    %v159 = vpop.f32.mrf.mxu0
    %v160 = vadd.f32 0.0, %v159
    %v161 = vpop.f32.mrf.mxu0
    %162 = vmatprep.mubr.f32.mxu0 0.0
    %163 = vmatmul.mubr.f32.gmra.mxu0 %v69
    %v164 = vpop.f32.mrf.mxu0
    %v165 = vadd.f32 0.0, %v164
    %v166 = vpop.f32.mrf.mxu0
    %167 = vdwg.mxu0
    %v168 = vmul.f32 %v50, %v54
    %v169 = vmul.f32 %v51, %v55
    %v170 = vmul.f32 %v52, %v56
    %v171 = vmul.f32 %v53, %v57
    %v172 = vsel %vm58, %v168, 0.0
    %173 = vadd.xlane.f32.xlu0 %v172
    %v174 = vpop.xlane.xlu0 %173
    %v175 = vsel %vm58, %v169, 0.0
    %176 = vadd.xlane.f32.xlu0 %v175
    %v177 = vpop.xlane.xlu0 %176
    %v178 = vsel %vm58, %v170, 0.0
    %179 = vadd.xlane.f32.xlu0 %v178
    %v180 = vpop.xlane.xlu0 %179
    %v181 = vsel %vm58, %v171, 0.0
    %182 = vadd.xlane.f32.xlu0 %v181
    %v183 = vpop.xlane.xlu0 %182
    %v184 = vsub.f32 1.0, %v174
    %v185 = vsub.f32 1.0, %v177
    %v186 = vsub.f32 1.0, %v180
    %v187 = vsub.f32 1.0, %v183
    %v188 = vmul.f32 %v184, 2.0
    %v189 = vmul.f32 %v185, 2.0
    %v190 = vmul.f32 %v186, 2.0
    %v191 = vmul.f32 %v187, 2.0
    %v192 = vadd.f32 %v188, 1e-06
    %v193 = vadd.f32 %v189, 1e-06
    %v194 = vadd.f32 %v190, 1e-06
    %v195 = vadd.f32 %v191, 1e-06
    %v196 = vmax.f32 %v192, 0.0
    %v197 = vmax.f32 %v193, 0.0
    %v198 = vmax.f32 %v194, 0.0
    %v199 = vmax.f32 %v195, 0.0
    %v200 = vrsqrt.pop %v196
    %v201 = vmul.f32 %v196, %v200
    %vm202 = vcmp.eq.f32.partialorder %v196, inf
    %v203 = vsel %vm202, %v196, %v201
    %vm204 = vcmp.eq.f32.partialorder %v196, 0.0
    %v205 = vand.u32 %v196, 2147483648
    %v206 = vsel %vm204, %v205, %v203
    %v207 = vrsqrt.pop %v197
    %v208 = vmul.f32 %v197, %v207
    %vm209 = vcmp.eq.f32.partialorder %v197, inf
    %v210 = vsel %vm209, %v197, %v208
    %vm211 = vcmp.eq.f32.partialorder %v197, 0.0
    %v212 = vand.u32 %v197, 2147483648
    %v213 = vsel %vm211, %v212, %v210
    %v214 = vrsqrt.pop %v198
    %v215 = vmul.f32 %v198, %v214
    %vm216 = vcmp.eq.f32.partialorder %v198, inf
    %v217 = vsel %vm216, %v198, %v215
    %vm218 = vcmp.eq.f32.partialorder %v198, 0.0
    %v219 = vand.u32 %v198, 2147483648
    %v220 = vsel %vm218, %v219, %v217
    %v221 = vrsqrt.pop %v199
    %v222 = vmul.f32 %v199, %v221
    %vm223 = vcmp.eq.f32.partialorder %v199, inf
    %v224 = vsel %vm223, %v199, %v222
    %vm225 = vcmp.eq.f32.partialorder %v199, 0.0
    %v226 = vand.u32 %v199, 2147483648
    %v227 = vsel %vm225, %v226, %v224
    %v228 = vlaneseq
    %v229 = vshrl.u32 %v228, 7
    %v230 = vadd.s32 %v229, 8
    %v231 = vadd.s32 %v229, 16
    %v232 = vadd.s32 %v229, 24
    %v233 = vlaneseq
    %v234 = vand.u32 %v233, 127
    %vm235 = vcmp.eq.s32.totalorder %v229, %v234
    %vm236 = vcmp.eq.s32.totalorder %v230, %v234
    %vm237 = vcmp.eq.s32.totalorder %v231, %v234
    %vm238 = vcmp.eq.s32.totalorder %v232, %v234
    %vm239 = vcmp.gt.f32.partialorder %v150, 0.9999685
    %vm240 = vcmp.gt.f32.partialorder %v155, 0.9999685
    %vm241 = vcmp.gt.f32.partialorder %v160, 0.9999685
    %vm242 = vcmp.gt.f32.partialorder %v165, 0.9999685
    %vm243 = vmor %vm235, %vm239
    %vm244 = vmor %vm236, %vm240
    %vm245 = vmor %vm237, %vm241
    %vm246 = vmor %vm238, %vm242
    %v247 = vsel %vm243, -4.9999e+09, %v150
    %v248 = vsel %vm244, -4.9999e+09, %v155
    %v249 = vsel %vm245, -4.9999e+09, %v160
    %v250 = vsel %vm246, -4.9999e+09, %v165
    %v251 = vsel %vm58, %v247, -inf
    %252 = vmax.xlane.f32.xlu0 %v251
    %v253 = vpop.xlane.xlu0 %252
    %v254 = vsel %vm58, %v248, -inf
    %255 = vmax.xlane.f32.xlu0 %v254
    %v256 = vpop.xlane.xlu0 %255
    %v257 = vsel %vm58, %v249, -inf
    %258 = vmax.xlane.f32.xlu0 %v257
    %v259 = vpop.xlane.xlu0 %258
    %v260 = vsel %vm58, %v250, -inf
    %261 = vmax.xlane.f32.xlu0 %v260
    %v262 = vpop.xlane.xlu0 %261
    %v263 = vmax.f32 %v251, %v254
    %v264 = vmax.f32 %v257, %v260
    %v265 = vmax.f32 %v263, %v264
    %v266 = vrot.slane %v265, 4
    %v267 = vmax.f32 %v265, %v266
    %v268 = vrot.slane %v267, 2
    %v269 = vmax.f32 %v267, %v268
    %v270 = vrot.slane %v269, 1
    %v271 = vmax.f32 %v269, %v270
    %v272 = vsel %vm235, 1.0, 0.0
    %v273 = vsel %vm236, 1.0, 0.0
    %v274 = vsel %vm237, 1.0, 0.0
    %v275 = vsel %vm238, 1.0, 0.0
    %v276 = vmul.f32 %v272, %v271
    %v277 = vmul.f32 %v273, %v271
    %v278 = vmul.f32 %v274, %v271
    %v279 = vmul.f32 %v275, %v271
    %v280 = vsel %vm58, %v276, 0.0
    %281 = vadd.xlane.f32.xlu0 %v280
    %v282 = vpop.xlane.xlu0 %281
    %v283 = vsel %vm58, %v277, 0.0
    %284 = vadd.xlane.f32.xlu0 %v283
    %v285 = vpop.xlane.xlu0 %284
    %v286 = vsel %vm58, %v278, 0.0
    %287 = vadd.xlane.f32.xlu0 %v286
    %v288 = vpop.xlane.xlu0 %287
    %v289 = vsel %vm58, %v279, 0.0
    %290 = vadd.xlane.f32.xlu0 %v289
    %v291 = vpop.xlane.xlu0 %290
    %v292 = vmax.f32 %v253, %v282
    %v293 = vmax.f32 %v256, %v285
    %v294 = vmax.f32 %v259, %v288
    %v295 = vmax.f32 %v262, %v291
    %v296 = vsub.f32 1.0, %v292
    %v297 = vsub.f32 1.0, %v293
    %v298 = vsub.f32 1.0, %v294
    %v299 = vsub.f32 1.0, %v295
    %v300 = vmul.f32 %v296, 2.0
    %v301 = vmul.f32 %v297, 2.0
    %v302 = vmul.f32 %v298, 2.0
    %v303 = vmul.f32 %v299, 2.0
    %v304 = vadd.f32 %v300, 1e-06
    %v305 = vadd.f32 %v301, 1e-06
    %v306 = vadd.f32 %v302, 1e-06
    %v307 = vadd.f32 %v303, 1e-06
    %v308 = vmax.f32 %v304, 0.0
    %v309 = vmax.f32 %v305, 0.0
    %v310 = vmax.f32 %v306, 0.0
    %v311 = vmax.f32 %v307, 0.0
    %v312 = vrsqrt.pop %v308
    %v313 = vmul.f32 %v308, %v312
    %vm314 = vcmp.eq.f32.partialorder %v308, inf
    %v315 = vsel %vm314, %v308, %v313
    %vm316 = vcmp.eq.f32.partialorder %v308, 0.0
    %v317 = vand.u32 %v308, 2147483648
    %v318 = vsel %vm316, %v317, %v315
    %v319 = vrsqrt.pop %v309
    %v320 = vmul.f32 %v309, %v319
    %vm321 = vcmp.eq.f32.partialorder %v309, inf
    %v322 = vsel %vm321, %v309, %v320
    %vm323 = vcmp.eq.f32.partialorder %v309, 0.0
    %v324 = vand.u32 %v309, 2147483648
    %v325 = vsel %vm323, %v324, %v322
    %v326 = vrsqrt.pop %v310
    %v327 = vmul.f32 %v310, %v326
    %vm328 = vcmp.eq.f32.partialorder %v310, inf
    %v329 = vsel %vm328, %v310, %v327
    %vm330 = vcmp.eq.f32.partialorder %v310, 0.0
    %v331 = vand.u32 %v310, 2147483648
    %v332 = vsel %vm330, %v331, %v329
    %v333 = vrsqrt.pop %v311
    %v334 = vmul.f32 %v311, %v333
    %vm335 = vcmp.eq.f32.partialorder %v311, inf
    %v336 = vsel %vm335, %v311, %v334
    %vm337 = vcmp.eq.f32.partialorder %v311, 0.0
    %v338 = vand.u32 %v311, 2147483648
    %v339 = vsel %vm337, %v338, %v336
    %v340 = vsub.f32 %v206, %v318
    %v341 = vsub.f32 %v213, %v325
    %v342 = vsub.f32 %v220, %v332
    %v343 = vsub.f32 %v227, %v339
    %v344 = vmax.f32 %v340, -2.0
    %v345 = vmax.f32 %v341, -2.0
    %v346 = vmax.f32 %v342, -2.0
    %v347 = vmax.f32 %v343, -2.0
    %v348 = vmin.f32 %v344, 2.0
    %v349 = vmin.f32 %v345, 2.0
    %v350 = vmin.f32 %v346, 2.0
    %v351 = vmin.f32 %v347, 2.0
    %v352 = vsub.f32 %v348, -2.0
    %v353 = vsub.f32 %v349, -2.0
    %v354 = vsub.f32 %v350, -2.0
    %v355 = vsub.f32 %v351, -2.0
    %v356 = vmul.f32 %v352, 127.75
    %v357 = vmul.f32 %v353, 127.75
    %v358 = vmul.f32 %v354, 127.75
    %v359 = vmul.f32 %v355, 127.75
    %v360 = vfloor.f32 %v356
    %v361 = vfloor.f32 %v357
    %v362 = vfloor.f32 %v358
    %v363 = vfloor.f32 %v359
    %v364 = vcvt.f32.s32.to.zero.pseudo %v360
    %v365 = vcvt.f32.s32.to.zero.pseudo %v361
    %v366 = vcvt.f32.s32.to.zero.pseudo %v362
    %v367 = vcvt.f32.s32.to.zero.pseudo %v363
    %vm368 = vcmp.gt.s32.totalorder %v364, 0
    %v369 = vsel %vm368, %v364, 0
    %vm370 = vcmp.gt.s32.totalorder %v365, 0
    %v371 = vsel %vm370, %v365, 0
    %vm372 = vcmp.gt.s32.totalorder %v366, 0
    %v373 = vsel %vm372, %v366, 0
    %vm374 = vcmp.gt.s32.totalorder %v367, 0
    %v375 = vsel %vm374, %v367, 0
    %vm376 = vcmp.lt.s32.totalorder %v369, 511
    %v377 = vsel %vm376, %v369, 511
    %vm378 = vcmp.lt.s32.totalorder %v371, 511
    %v379 = vsel %vm378, %v371, 511
    %vm380 = vcmp.lt.s32.totalorder %v373, 511
    %v381 = vsel %vm380, %v373, 511
    %vm382 = vcmp.lt.s32.totalorder %v375, 511
    %v383 = vsel %vm382, %v375, 511
    %v384 = vadd.s32 %v377, 1
    %v385 = vadd.s32 %v379, 1
    %v386 = vadd.s32 %v381, 1
    %v387 = vadd.s32 %v383, 1
    %vm388 = vcmp.lt.s32.totalorder %v384, 511
    %v389 = vsel %vm388, %v384, 511
    %vm390 = vcmp.lt.s32.totalorder %v385, 511
    %v391 = vsel %vm390, %v385, 511
    %vm392 = vcmp.lt.s32.totalorder %v386, 511
    %v393 = vsel %vm392, %v386, 511
    %vm394 = vcmp.lt.s32.totalorder %v387, 511
    %v395 = vsel %vm394, %v387, 511
    %v396 = vcvt.s32.f32 %v377
    %v397 = vcvt.s32.f32 %v379
    %v398 = vcvt.s32.f32 %v381
    %v399 = vcvt.s32.f32 %v383
    %v400 = vmul.f32 %v396, 0.007827789
    %v401 = vmul.f32 %v397, 0.007827789
    %v402 = vmul.f32 %v398, 0.007827789
    %v403 = vmul.f32 %v399, 0.007827789
    %v404 = vsub.f32 %v352, %v400
    %v405 = vsub.f32 %v353, %v401
    %v406 = vsub.f32 %v354, %v402
    %v407 = vsub.f32 %v355, %v403
    %v408 = vmul.f32 %v404, 127.75
    %v409 = vmul.f32 %v405, 127.75
    %v410 = vmul.f32 %v406, 127.75
    %v411 = vmul.f32 %v407, 127.75
    %v412 = vsub.f32 1.0, %v408
    %v413 = vsub.f32 1.0, %v409
    %v414 = vsub.f32 1.0, %v410
    %v415 = vsub.f32 1.0, %v411
    %v416 = vadd.s32 %v234, 128
    %v417 = vadd.s32 %v234, 256
    %v418 = vadd.s32 %v234, 384
    %vm419 = vcmp.eq.s32.totalorder %v234, %v377
    %vm420 = vcmp.eq.s32.totalorder %v416, %v377
    %vm421 = vcmp.eq.s32.totalorder %v417, %v377
    %vm422 = vcmp.eq.s32.totalorder %v418, %v377
    %vm423 = vcmp.eq.s32.totalorder %v234, %v379
    %vm424 = vcmp.eq.s32.totalorder %v416, %v379
    %vm425 = vcmp.eq.s32.totalorder %v417, %v379
    %vm426 = vcmp.eq.s32.totalorder %v418, %v379
    %vm427 = vcmp.eq.s32.totalorder %v234, %v381
    %vm428 = vcmp.eq.s32.totalorder %v416, %v381
    %vm429 = vcmp.eq.s32.totalorder %v417, %v381
    %vm430 = vcmp.eq.s32.totalorder %v418, %v381
    %vm431 = vcmp.eq.s32.totalorder %v234, %v383
    %vm432 = vcmp.eq.s32.totalorder %v416, %v383
    %vm433 = vcmp.eq.s32.totalorder %v417, %v383
    %vm434 = vcmp.eq.s32.totalorder %v418, %v383
    %v435 = vsel %vm419, %v412, 0.0
    %v436 = vsel %vm420, %v412, 0.0
    %v437 = vsel %vm421, %v412, 0.0
    %v438 = vsel %vm422, %v412, 0.0
    %v439 = vsel %vm423, %v413, 0.0
    %v440 = vsel %vm424, %v413, 0.0
    %v441 = vsel %vm425, %v413, 0.0
    %v442 = vsel %vm426, %v413, 0.0
    %v443 = vsel %vm427, %v414, 0.0
    %v444 = vsel %vm428, %v414, 0.0
    %v445 = vsel %vm429, %v414, 0.0
    %v446 = vsel %vm430, %v414, 0.0
    %v447 = vsel %vm431, %v415, 0.0
    %v448 = vsel %vm432, %v415, 0.0
    %v449 = vsel %vm433, %v415, 0.0
    %v450 = vsel %vm434, %v415, 0.0
    %vm451 = vcmp.eq.s32.totalorder %v234, %v389
    %vm452 = vcmp.eq.s32.totalorder %v416, %v389
    %vm453 = vcmp.eq.s32.totalorder %v417, %v389
    %vm454 = vcmp.eq.s32.totalorder %v418, %v389
    %vm455 = vcmp.eq.s32.totalorder %v234, %v391
    %vm456 = vcmp.eq.s32.totalorder %v416, %v391
    %vm457 = vcmp.eq.s32.totalorder %v417, %v391
    %vm458 = vcmp.eq.s32.totalorder %v418, %v391
    %vm459 = vcmp.eq.s32.totalorder %v234, %v393
    %vm460 = vcmp.eq.s32.totalorder %v416, %v393
    %vm461 = vcmp.eq.s32.totalorder %v417, %v393
    %vm462 = vcmp.eq.s32.totalorder %v418, %v393
    %vm463 = vcmp.eq.s32.totalorder %v234, %v395
    %vm464 = vcmp.eq.s32.totalorder %v416, %v395
    %vm465 = vcmp.eq.s32.totalorder %v417, %v395
    %vm466 = vcmp.eq.s32.totalorder %v418, %v395
    %v467 = vsub.f32 1.0, %v412
    %v468 = vsub.f32 1.0, %v413
    %v469 = vsub.f32 1.0, %v414
    %v470 = vsub.f32 1.0, %v415
    %v471 = vsel %vm451, %v467, 0.0
    %v472 = vsel %vm452, %v467, 0.0
    %v473 = vsel %vm453, %v467, 0.0
    %v474 = vsel %vm454, %v467, 0.0
    %v475 = vsel %vm455, %v468, 0.0
    %v476 = vsel %vm456, %v468, 0.0
    %v477 = vsel %vm457, %v468, 0.0
    %v478 = vsel %vm458, %v468, 0.0
    %v479 = vsel %vm459, %v469, 0.0
    %v480 = vsel %vm460, %v469, 0.0
    %v481 = vsel %vm461, %v469, 0.0
    %v482 = vsel %vm462, %v469, 0.0
    %v483 = vsel %vm463, %v470, 0.0
    %v484 = vsel %vm464, %v470, 0.0
    %v485 = vsel %vm465, %v470, 0.0
    %v486 = vsel %vm466, %v470, 0.0
    %v487 = vadd.f32 %v435, %v439
    %v488 = vadd.f32 %v487, %v443
    %v489 = vadd.f32 %v488, %v447
    %v490 = vrot.slane %v489, 4
    %v491 = vadd.f32 %v489, %v490
    %v492 = vrot.slane %v491, 2
    %v493 = vadd.f32 %v491, %v492
    %v494 = vrot.slane %v493, 1
    %v495 = vadd.f32 %v493, %v494
    %v496 = vadd.f32 %v436, %v440
    %v497 = vadd.f32 %v496, %v444
    %v498 = vadd.f32 %v497, %v448
    %v499 = vrot.slane %v498, 4
    %v500 = vadd.f32 %v498, %v499
    %v501 = vrot.slane %v500, 2
    %v502 = vadd.f32 %v500, %v501
    %v503 = vrot.slane %v502, 1
    %v504 = vadd.f32 %v502, %v503
    %v505 = vadd.f32 %v437, %v441
    %v506 = vadd.f32 %v505, %v445
    %v507 = vadd.f32 %v506, %v449
    %v508 = vrot.slane %v507, 4
    %v509 = vadd.f32 %v507, %v508
    %v510 = vrot.slane %v509, 2
    %v511 = vadd.f32 %v509, %v510
    %v512 = vrot.slane %v511, 1
    %v513 = vadd.f32 %v511, %v512
    %v514 = vadd.f32 %v438, %v442
    %v515 = vadd.f32 %v514, %v446
    %v516 = vadd.f32 %v515, %v450
    %v517 = vrot.slane %v516, 4
    %v518 = vadd.f32 %v516, %v517
    %v519 = vrot.slane %v518, 2
    %v520 = vadd.f32 %v518, %v519
    %v521 = vrot.slane %v520, 1
    %v522 = vadd.f32 %v520, %v521
    %v523 = vadd.f32 %v471, %v475
    %v524 = vadd.f32 %v523, %v479
    %v525 = vadd.f32 %v524, %v483
    %v526 = vrot.slane %v525, 4
    %v527 = vadd.f32 %v525, %v526
    %v528 = vrot.slane %v527, 2
    %v529 = vadd.f32 %v527, %v528
    %v530 = vrot.slane %v529, 1
    %v531 = vadd.f32 %v529, %v530
    %v532 = vadd.f32 %v472, %v476
    %v533 = vadd.f32 %v532, %v480
    %v534 = vadd.f32 %v533, %v484
    %v535 = vrot.slane %v534, 4
    %v536 = vadd.f32 %v534, %v535
    %v537 = vrot.slane %v536, 2
    %v538 = vadd.f32 %v536, %v537
    %v539 = vrot.slane %v538, 1
    %v540 = vadd.f32 %v538, %v539
    %v541 = vadd.f32 %v473, %v477
    %v542 = vadd.f32 %v541, %v481
    %v543 = vadd.f32 %v542, %v485
    %v544 = vrot.slane %v543, 4
    %v545 = vadd.f32 %v543, %v544
    %v546 = vrot.slane %v545, 2
    %v547 = vadd.f32 %v545, %v546
    %v548 = vrot.slane %v547, 1
    %v549 = vadd.f32 %v547, %v548
    %v550 = vadd.f32 %v474, %v478
    %v551 = vadd.f32 %v550, %v482
    %v552 = vadd.f32 %v551, %v486
    %v553 = vrot.slane %v552, 4
    %v554 = vadd.f32 %v552, %v553
    %v555 = vrot.slane %v554, 2
    %v556 = vadd.f32 %v554, %v555
    %v557 = vrot.slane %v556, 1
    %v558 = vadd.f32 %v556, %v557
    %v559 = vadd.f32 %v495, %v531
    %v560 = vadd.f32 %v504, %v540
    %v561 = vadd.f32 %v513, %v549
    %v562 = vadd.f32 %v522, %v558
    %vm563 = vcmask 1040384
    %v564 = vsel %vm563, %v559, 0.0
    %v565 = vsel %vm563, %v560, 0.0
    %v566 = vadd.f32 %v564, %v565
    %v567 = vsel %vm563, %v561, 0.0
    %v568 = vadd.f32 %v566, %v567
    %v569 = vsel %vm563, %v562, 0.0
    %v570 = vadd.f32 %v568, %v569
    %571 = vadd.xlane.f32.xlu0 %v570
    %v572 = vpop.xlane.xlu0 %571
    %v573 = vrot.slane %v572, 4
    %v574 = vadd.f32 %v572, %v573
    %v575 = vrot.slane %v574, 2
    %v576 = vadd.f32 %v574, %v575
    %v577 = vrot.slane %v576, 1
    %v578 = vadd.f32 %v576, %v577
    %s579 = vtos %v578
    %s580 = sadd.f32 %s579, 1e-06
    %v581 = vstv %s580
    %v582 = vrcp.pop %v581
    %v583 = vmul.f32 %v559, %v582
    %v584 = vmul.f32 %v560, %v582
    %v585 = vmul.f32 %v561, %v582
    %v586 = vmul.f32 %v562, %v582
    %s587 = sld [smem:[#allocation2]]
    %s588 = ssub.f32 1.0, %s587
    %v589 = vld [vmem:[%s2] sm:$0xf]
    %v590 = vstv %s588
    %v591 = vmul.f32 %v590, %v589
    %v592 = vstv %s587
    %v593 = vmul.f32 %v592, %v583
    %v594 = vmul.f32 %v592, %v584
    %v595 = vmul.f32 %v592, %v585
    %v596 = vmul.f32 %v592, %v586
    %v601 = vcombine.low %v593, %v594
    %v602 = vcombine.low %v595, %v596
    %v604 = vunpack.c.l.s4 1966171168
    %v605 = vunpack.c.0.s8 %v604
    %v606 = vlaneseq
    %v607 = vshrl.u32 %v606, 7
    %v608 = vsub.s32 %v605, %v607
    %v609 = vrot.slane %v601, %v608
    %v611 = vunpack.c.l.s4 1966171168
    %v612 = vunpack.c.0.s8 %v611
    %v613 = vlaneseq
    %v614 = vshrl.u32 %v613, 7
    %v615 = vsub.s32 %v612, %v614
    %v616 = vrot.slane %v602, %v615
    %v617 = vcombine.low %v609, %v616
    %v619 = vunpack.c.l.s4 1966171168
    %v620 = vunpack.c.0.s8 %v619
    %v621 = vlaneseq
    %v622 = vshrl.u32 %v621, 7
    %v623 = vsub.s32 %v620, %v622
    %v624 = vrot.slane %v617, %v623
    %v626 = vadd.f32 %v591, %v624
    %v627 = vlaneseq
    %vm628 = vcmp.ge.s32.totalorder %v627, 0
    %vm629 = vcmp.lt.s32.totalorder %v627, 512
    %vm630 = vmand %vm628, %vm629
    %631 = vst.msk [vmem:[#allocation10] sm:$0xf] %vm630, %v626
    %v633 = vlaneseq
    %v634 = vshrl.u32 %v633, 7
    %v635 = vsub.s32 0, %v634
    %v636 = vrot.slane %v626, %v635
    %v637 = vlaneseq
    %v638 = vshrl.u32 %v637, 7
    %v639 = vsub.s32 1, %v638
    %v640 = vrot.slane %v626, %v639
    %v641 = vlaneseq
    %v642 = vshrl.u32 %v641, 7
    %v643 = vsub.s32 2, %v642
    %v644 = vrot.slane %v626, %v643
    %v645 = vlaneseq
    %v646 = vshrl.u32 %v645, 7
    %v647 = vsub.s32 3, %v646
    %v648 = vrot.slane %v626, %v647
    %v653 = vsel %vm563, %v636, 0.0
    %v654 = vsel %vm563, %v640, 0.0
    %v655 = vadd.f32 %v653, %v654
    %v656 = vsel %vm563, %v644, 0.0
    %v657 = vadd.f32 %v655, %v656
    %v658 = vsel %vm563, %v648, 0.0
    %v659 = vadd.f32 %v657, %v658
    %660 = vadd.xlane.f32.xlu0 %v659
    %v661 = vpop.xlane.xlu0 %660
    %v662 = vrot.slane %v661, 4
    %v663 = vadd.f32 %v661, %v662
    %v664 = vrot.slane %v663, 2
    %v665 = vadd.f32 %v663, %v664
    %v666 = vrot.slane %v665, 1
    %v667 = vadd.f32 %v665, %v666
    %s668 = vtos %v667
    %v669 = vstv %s668
    %v670 = vrcp.pop %v669
    %v671 = vmul.f32 %v626, %v670
    %vm672 = vcmp.le.s32.totalorder %v234, %v377
    %vm673 = vcmp.le.s32.totalorder %v416, %v377
    %vm674 = vcmp.le.s32.totalorder %v417, %v377
    %vm675 = vcmp.le.s32.totalorder %v418, %v377
    %vm676 = vcmp.le.s32.totalorder %v234, %v379
    %vm677 = vcmp.le.s32.totalorder %v416, %v379
    %vm678 = vcmp.le.s32.totalorder %v417, %v379
    %vm679 = vcmp.le.s32.totalorder %v418, %v379
    %vm680 = vcmp.le.s32.totalorder %v234, %v381
    %vm681 = vcmp.le.s32.totalorder %v416, %v381
    %vm682 = vcmp.le.s32.totalorder %v417, %v381
    %vm683 = vcmp.le.s32.totalorder %v418, %v381
    %vm684 = vcmp.le.s32.totalorder %v234, %v383
    %vm685 = vcmp.le.s32.totalorder %v416, %v383
    %vm686 = vcmp.le.s32.totalorder %v417, %v383
    %vm687 = vcmp.le.s32.totalorder %v418, %v383
    %v688 = vsel %vm672, 1.0, 0.0
    %v689 = vsel %vm673, 1.0, 0.0
    %v690 = vsel %vm674, 1.0, 0.0
    %v691 = vsel %vm675, 1.0, 0.0
    %v692 = vsel %vm676, 1.0, 0.0
    %v693 = vsel %vm677, 1.0, 0.0
    %v694 = vsel %vm678, 1.0, 0.0
    %v695 = vsel %vm679, 1.0, 0.0
    %v696 = vsel %vm680, 1.0, 0.0
    %v697 = vsel %vm681, 1.0, 0.0
    %v698 = vsel %vm682, 1.0, 0.0
    %v699 = vsel %vm683, 1.0, 0.0
    %v700 = vsel %vm684, 1.0, 0.0
    %v701 = vsel %vm685, 1.0, 0.0
    %v702 = vsel %vm686, 1.0, 0.0
    %v703 = vsel %vm687, 1.0, 0.0
    %v705 = vlaneseq
    %v706 = vshrl.u32 %v705, 7
    %v707 = vsub.s32 0, %v706
    %v708 = vrot.slane %v671, %v707
    %v709 = vlaneseq
    %v710 = vshrl.u32 %v709, 7
    %v711 = vsub.s32 1, %v710
    %v712 = vrot.slane %v671, %v711
    %v713 = vlaneseq
    %v714 = vshrl.u32 %v713, 7
    %v715 = vsub.s32 2, %v714
    %v716 = vrot.slane %v671, %v715
    %v717 = vlaneseq
    %v718 = vshrl.u32 %v717, 7
    %v719 = vsub.s32 3, %v718
    %v720 = vrot.slane %v671, %v719
    %v725 = vmul.f32 %v688, %v708
    %v726 = vmul.f32 %v689, %v712
    %v727 = vmul.f32 %v690, %v716
    %v728 = vmul.f32 %v691, %v720
    %v729 = vmul.f32 %v692, %v708
    %v730 = vmul.f32 %v693, %v712
    %v731 = vmul.f32 %v694, %v716
    %v732 = vmul.f32 %v695, %v720
    %v733 = vmul.f32 %v696, %v708
    %v734 = vmul.f32 %v697, %v712
    %v735 = vmul.f32 %v698, %v716
    %v736 = vmul.f32 %v699, %v720
    %v737 = vmul.f32 %v700, %v708
    %v738 = vmul.f32 %v701, %v712
    %v739 = vmul.f32 %v702, %v716
    %v740 = vmul.f32 %v703, %v720
    %v741 = vadd.f32 %v725, %v726
    %v742 = vadd.f32 %v741, %v727
    %v743 = vadd.f32 %v742, %v728
    %744 = vadd.xlane.f32.xlu0 %v743
    %v745 = vpop.xlane.xlu0 %744
    %v746 = vadd.f32 %v729, %v730
    %v747 = vadd.f32 %v746, %v731
    %v748 = vadd.f32 %v747, %v732
    %749 = vadd.xlane.f32.xlu0 %v748
    %v750 = vpop.xlane.xlu0 %749
    %v751 = vadd.f32 %v733, %v734
    %v752 = vadd.f32 %v751, %v735
    %v753 = vadd.f32 %v752, %v736
    %754 = vadd.xlane.f32.xlu0 %v753
    %v755 = vpop.xlane.xlu0 %754
    %v756 = vadd.f32 %v737, %v738
    %v757 = vadd.f32 %v756, %v739
    %v758 = vadd.f32 %v757, %v740
    %759 = vadd.xlane.f32.xlu0 %v758
    %v760 = vpop.xlane.xlu0 %759
    %v761 = vmul.f32 %v340, %v745
    %v762 = vmul.f32 %v341, %v750
    %v763 = vmul.f32 %v342, %v755
    %v764 = vmul.f32 %v343, %v760
    %vm765 = vcmask 7168
    %v766 = vsel %vm765, %v761, 0.0
    %v767 = vsel %vm765, %v762, 0.0
    %v768 = vadd.f32 %v766, %v767
    %v769 = vsel %vm765, %v763, 0.0
    %v770 = vadd.f32 %v768, %v769
    %v771 = vsel %vm765, %v764, 0.0
    %v772 = vadd.f32 %v770, %v771
    %773 = vadd.xlane.f32.xlu0 %v772
    %v774 = vpop.xlane.xlu0 %773
    %v775 = vrot.slane %v774, 4
    %v776 = vadd.f32 %v774, %v775
    %v777 = vrot.slane %v776, 2
    %v778 = vadd.f32 %v776, %v777
    %v779 = vrot.slane %v778, 1
    %v780 = vadd.f32 %v778, %v779
    %s781 = vtos %v780
    %s782 = smul.f32 %s781, 0.03125
    %s783 = scalar_lea.smem [#allocation9], 0
    %784 = sst [smem:[%s783]] %s782
    // Predicated region
    $region26: #{_dsm_forward.1} parent=1 // pred_check
      _
    $region27: #{_dsm_forward.1} parent=1 // pred_check_branch
      %786 = sbr.rel (0) target = $region29
    $region28: #{_dsm_forward.1} parent=1 // pred_region
      %s788 = ssub.s32 16, 16
      %789 = vsyncadd [#allocation6], %s788
      %792 = dma.smem_to_hbm [#allocation9], 16, %s4, [#allocation6]
    $region29: #{_dsm_forward.1} parent=1 // pred_fallthru
      _
    // Predicated region
    $region30: #{_dsm_forward.1} parent=1 // pred_check
      _
    $region31: #{_dsm_forward.1} parent=1 // pred_check_branch
      %794 = sbr.rel (0) target = $region33
    $region32: #{_dsm_forward.1} parent=1 // pred_region
      %s796 = ssub.s32 64, 64
      %797 = vsyncadd [#allocation5], %s796
      %s799 = sshll.u32 [#allocation10], 4
      %s800 = int_to_ptr.vmem [resolvable:$true] %s799
      %802 = dma.vmem_to_hbm [thread:$0]  %s800, 64, %s5, [#allocation5]
    $region33: #{_dsm_forward.1} parent=1 // pred_fallthru
      _
    // Predicated region
    $region34: #{_dsm_forward.1} parent=1 // pred_check
      _
    $region35: #{_dsm_forward.1} parent=1 // pred_check_branch
      %804 = sbr.rel (0) target = $region37
    $region36: #{_dsm_forward.1} parent=1 // pred_region
      %805 = dma.done [#allocation6], 16
    $region37: #{_dsm_forward.1} parent=1 // pred_fallthru
      _
    // Predicated region
    $region38: #{_dsm_forward.1} parent=1 // pred_check
      _
    $region39: #{_dsm_forward.1} parent=1 // pred_check_branch
      %807 = sbr.rel (0) target = $region41
    $region40: #{_dsm_forward.1} parent=1 // pred_region
      %808 = dma.done [#allocation5], 64
    $region41: #{_dsm_forward.1} parent=1 // pred_fallthru
      _
    %809 = sfence
    %810 = vsyncpa [#allocation4], 1
    %811 = vsyncpa [#allocation8], 1
    %812 = vsyncpa [#allocation5], 1
    %813 = vsyncpa [#allocation6], 1

</llo_original>
